<compile_context>
chip_gen: v6e
topology: v6e:2x2x1
jax: 0.10.0
libtpu: 0.0.40
codegen_flags: <defaults>
</compile_context>

<pallas_src>
import functools

import jax
import jax.numpy as jnp
from jax.experimental import pallas as pl


LANE = 128  # vreg lane count; feature dims are padded to multiples of this.


def _round_up(n, m):
    return ((n + m - 1) // m) * m


def _fused_mlp_kernel(x_ref, *refs):
    """Fused MLP_withoutFC: chained ReLU(h @ W + b) over all layers.

    refs = (w0, b0, w1, b1, ..., out). Every operand is a full-array VMEM
    block; the (1, N_pad) intermediates never leave vregs/VMEM. Weights may
    be bf16 (HBM traffic); compute is f32 (MXU f32 accumulate, f32 VPU
    bias/ReLU).
    """
    o_ref = refs[-1]
    wb_refs = refs[:-1]
    h = x_ref[...]                                  # (1, K) f32
    for i in range(0, len(wb_refs), 2):
        w = wb_refs[i][...].astype(jnp.float32)     # (K_pad, N_pad)
        b = wb_refs[i + 1][...]                     # (1, N_pad) f32
        h = jnp.dot(h, w, preferred_element_type=jnp.float32)
        h = jnp.maximum(h + b, 0.0)                 # padded lanes stay 0
    o_ref[...] = h.astype(o_ref.dtype)


def prepare_padded_params(params, input_size, weight_dtype=jnp.bfloat16):
    """One-time (init-time) padding of the MLP parameters.

    * Output feature dims are padded to multiples of 128 (lane-dense stores);
      padded weight columns and bias lanes are zero, so padded activation
      lanes are exactly zero after every ReLU layer.
    * The first layer keeps K = input_size unpadded (full-array block), so no
      per-call activation padding is needed.
    * Weights stored as `weight_dtype` (bf16 by default), biases as f32.

    Returns (flat_padded_list [w0, b0, w1, b1, ...], true_out_dim).
    """
    if not params:
        raise ValueError("MLP_withoutFC requires at least one hidden layer.")

    padded = []
    in_dim_pad = input_size            # first layer contracts over raw K
    true_out_dim = None
    for (w, b) in params:
        d_in, d_out = w.shape
        d_out_pad = _round_up(d_out, LANE)
        w_pad = jnp.zeros((in_dim_pad, d_out_pad), jnp.float32)
        w_pad = w_pad.at[:d_in, :d_out].set(w)
        b_pad = jnp.zeros((1, d_out_pad), jnp.float32)
        b_pad = b_pad.at[:, :d_out].set(b.reshape(1, d_out))
        padded += [w_pad.astype(weight_dtype), b_pad]
        in_dim_pad = d_out_pad
        true_out_dim = d_out
    return padded, true_out_dim


def fused_mlp_padded(x_row, padded_params):
    """Run the whole MLP stack in a single Pallas call.

    x_row:         (1, input_size) f32
    padded_params: flat [w0, b0, w1, b1, ...] produced by prepare_padded_params
    returns        (1, out_dim_pad) f32 (lane-dense padded slab)
    """
    out_dim_pad = padded_params[-1].shape[1]

    # Single grid point: all tiles (a few 128-wide slabs, << VMEM on every
    # generation) are full-array blocks; no streaming / grid needed.
    in_specs = [pl.BlockSpec(x_row.shape, lambda: (0, 0))]
    for arr in padded_params:
        in_specs.append(pl.BlockSpec(arr.shape, lambda: (0, 0)))

    return pl.pallas_call(
        _fused_mlp_kernel,
        out_shape=jax.ShapeDtypeStruct((1, out_dim_pad), jnp.float32),
        in_specs=in_specs,
        out_specs=pl.BlockSpec((1, out_dim_pad), lambda: (0, 0)),
    )(x_row, *padded_params)


def make_meta_mlp_time_embed_basis_forward(params, input_size,
                                           weight_dtype=jnp.bfloat16):
    """Build a jitted forward closed over init-time padded params."""
    padded, true_out_dim = prepare_padded_params(params, input_size,
                                                 weight_dtype)

    @jax.jit
    def forward(x):
        # MetaMLPTimeEmbed_Basis.forward: flatten everything to (1, -1).
        h = x.reshape(1, -1).astype(jnp.float32)
        out_pad = fused_mlp_padded(h, padded)
        # Lazy slice to the true output width under the same jit: fuses with
        # the kernel epilogue instead of being a separate device launch.
        return out_pad[:, :true_out_dim]

    return forward


def init_mlp_params(key, input_size, hidden_sizes):
    """Deterministic PyTorch-style init: U(-1/sqrt(fan_in), 1/sqrt(fan_in))."""
    params = []
    sizes = [input_size] + list(hidden_sizes)
    for i in range(len(hidden_sizes)):
        key, kw, kb = jax.random.split(key, 3)
        fan_in = sizes[i]
        bound = 1.0 / jnp.sqrt(jnp.float32(fan_in))
        w = jax.random.uniform(kw, (sizes[i], sizes[i + 1]),
                               minval=-bound, maxval=bound, dtype=jnp.float32)
        b = jax.random.uniform(kb, (1, sizes[i + 1]),
                               minval=-bound, maxval=bound, dtype=jnp.float32)
        params.append((w, b))
    return params


if __name__ == "__main__":
    # Small shapes consistent with the module's constructor.
    state_dim, control_dim, history_len = 4, 2, 3
    hidden_sizes = (32, 32)
    input_size = (state_dim + control_dim) * (history_len + 1)  # 24

    key = jax.random.PRNGKey(0)
    key, kx = jax.random.split(key)
    # Raw input: (history_len + 1, state_dim + control_dim); forward flattens it.
    x = jax.random.normal(kx, (history_len + 1, state_dim + control_dim),
                          dtype=jnp.float32)

    params = init_mlp_params(key, input_size, hidden_sizes)
    forward = make_meta_mlp_time_embed_basis_forward(params, input_size)

    out = jax.block_until_ready(forward(x))

    # Pure-JAX reference (dropout is identity at inference). Uses the same
    # bf16-quantized weights the kernel consumes, so the comparison is exact
    # up to f32 accumulation order.
    h_ref = x.reshape(1, -1)
    for (w, b) in params:
        w_q = w.astype(jnp.bfloat16).astype(jnp.float32)
        h_ref = jnp.maximum(h_ref @ w_q + b, 0.0)

    assert out.shape == (1, hidden_sizes[-1])
    assert jnp.allclose(out, h_ref, atol=1e-5, rtol=1e-5)

    print("KERNEL_OK")
</pallas_src>

<mosaic_0001>
module attributes {stable_mosaic.version = 11 : i64} {
  func.func @_fused_mlp_kernel(%arg0: memref<1x24xf32, #tpu.memory_space<vmem>>, %arg1: memref<24x128xbf16, #tpu.memory_space<vmem>>, %arg2: memref<1x128xf32, #tpu.memory_space<vmem>>, %arg3: memref<128x128xbf16, #tpu.memory_space<vmem>>, %arg4: memref<1x128xf32, #tpu.memory_space<vmem>>, %arg5: memref<1x128xf32, #tpu.memory_space<vmem>>) attributes {dimension_semantics = [], scalar_prefetch = 0 : i64, scratch_operands = 0 : i64, tpu.core_type = #tpu.core_type<tc>} {
    %c0 = arith.constant 0 : index
    %c0_0 = arith.constant 0 : index
    %0 = vector.load %arg0[%c0, %c0_0] : memref<1x24xf32, #tpu.memory_space<vmem>>, vector<1x24xf32>
    %c0_1 = arith.constant 0 : index
    %c0_2 = arith.constant 0 : index
    %1 = vector.load %arg1[%c0_1, %c0_2] : memref<24x128xbf16, #tpu.memory_space<vmem>>, vector<24x128xbf16>
    %2 = arith.extf %1 : vector<24x128xbf16> to vector<24x128xf32>
    %c0_3 = arith.constant 0 : index
    %c0_4 = arith.constant 0 : index
    %3 = vector.load %arg2[%c0_3, %c0_4] : memref<1x128xf32, #tpu.memory_space<vmem>>, vector<1x128xf32>
    %cst = arith.constant dense<0.000000e+00> : vector<1x128xf32>
    %4 = tpu.matmul %0, %2, %cst {dimension_numbers = #tpu.dot_dimension_numbers<[1], [0], [0], [1], [0, 0, 1, 1], [], []>} : vector<1x24xf32>, vector<24x128xf32>, vector<1x128xf32> -> vector<1x128xf32>
    %5 = arith.addf %4, %3 : vector<1x128xf32>
    %cst_5 = arith.constant 0.000000e+00 : f32
    %6 = vector.broadcast %cst_5 : f32 to vector<1x128xf32>
    %7 = arith.maximumf %5, %6 : vector<1x128xf32>
    %c0_6 = arith.constant 0 : index
    %c0_7 = arith.constant 0 : index
    %8 = vector.load %arg3[%c0_6, %c0_7] : memref<128x128xbf16, #tpu.memory_space<vmem>>, vector<128x128xbf16>
    %9 = arith.extf %8 : vector<128x128xbf16> to vector<128x128xf32>
    %c0_8 = arith.constant 0 : index
    %c0_9 = arith.constant 0 : index
    %10 = vector.load %arg4[%c0_8, %c0_9] : memref<1x128xf32, #tpu.memory_space<vmem>>, vector<1x128xf32>
    %cst_10 = arith.constant dense<0.000000e+00> : vector<1x128xf32>
    %11 = tpu.matmul %7, %9, %cst_10 {dimension_numbers = #tpu.dot_dimension_numbers<[1], [0], [0], [1], [0, 0, 1, 1], [], []>} : vector<1x128xf32>, vector<128x128xf32>, vector<1x128xf32> -> vector<1x128xf32>
    %12 = arith.addf %11, %10 : vector<1x128xf32>
    %cst_11 = arith.constant 0.000000e+00 : f32
    %13 = vector.broadcast %cst_11 : f32 to vector<1x128xf32>
    %14 = arith.maximumf %12, %13 : vector<1x128xf32>
    %c0_12 = arith.constant 0 : index
    %c0_13 = arith.constant 0 : index
    %15 = vector.load %arg5[%c0_12, %c0_13] : memref<1x128xf32, #tpu.memory_space<vmem>>, vector<1x128xf32>
    tpu.vector_store %arg5[%c0_12, %c0_13], %14 {strides = array<i32>} : memref<1x128xf32, #tpu.memory_space<vmem>>, vector<1x128xf32>,
    return
  }
}

</mosaic_0001>

<llo_original>
// kernel: forward.1
$region0: #{forward.1}
  #allocation0 [shape = 'u32[]', space=smem, size = 0x4, offset = 0x4, fixed_abs, tag = 'smem constant byte address 0x4 - core index']
  #allocation1 [shape = 'u32[144,128]{1,0:T(1,128)}', space=vmem, size = 0x12000, scoped, tag = 'internal scratch']
  %s0 = inlined_call_operand.vmem [shape: f32[1,24], index: 0, kind: input, shape index: {}]
  %s1 = inlined_call_operand.hbm [shape: bf16[24,128], index: 1, kind: input, shape index: {}]
  %s2 = inlined_call_operand.vmem [shape: f32[1,128], index: 2, kind: input, shape index: {}]
  %s3 = inlined_call_operand.hbm [shape: bf16[128,128], index: 3, kind: input, shape index: {}]
  %s4 = inlined_call_operand.vmem [shape: f32[1,128], index: 4, kind: input, shape index: {}]
  %s5 = inlined_call_operand.hbm [shape: f32[1,128], index: 5, kind: output, shape index: {}]
  %s6 = sld [smem:[#allocation0]]
  $region38: #{forward.1} parent=0
    _
  %s8 = ssub.s32 1, %s6
  %s9 = scalar_select 0, %s8, %s6
  $region1: #{forward.1} parent=0
    #allocation2 [shape = 'u8[6144]{0}', space=vmem, size = 0x1800, scoped, tag = 'input window, operand 1, single buffered']
    #allocation3 [shape = 's32[1]{0}', space=sflag, size = 0x4, scoped, tag = 'scoped memory for forward.1']
    #allocation4 [shape = 's32[1]{0}', space=sflag, size = 0x4, scoped, tag = 'scoped memory for forward.1']
    #allocation5 [shape = 'u8[32768]{0}', space=vmem, size = 0x8000, scoped, tag = 'input window, operand 3, single buffered']
    #allocation6 [shape = 's32[1]{0}', space=sflag, size = 0x4, scoped, tag = 'scoped memory for forward.1']
    #allocation7 [shape = 'u8[512]{0}', space=vmem, size = 0x400, scoped, tag = 'output window, operand 0, single buffered']
    %10 = vsyncpa [#allocation3], 0
    %11 = vsyncpa [#allocation6], 0
    %12 = vsyncpa [#allocation4], 0
    // Predicated region
    $region2: #{forward.1} parent=1 // pred_check
      _
    $region3: #{forward.1} parent=1 // pred_check_branch
      %14 = sbr.rel (0) target = $region5
    $region4: #{forward.1} parent=1 // pred_region
      _
    $region5: #{forward.1} parent=1 // pred_fallthru
      _
    // Predicated region
    $region6: #{forward.1} parent=1 // pred_check
      _
    $region7: #{forward.1} parent=1 // pred_check_branch
      %16 = sbr.rel (0) target = $region9
    $region8: #{forward.1} parent=1 // pred_region
      %s18 = ssub.s32 192, 192
      %19 = vsyncadd [#allocation3], %s18
      %s20 = sshll.u32 [#allocation2], 4
      %s21 = int_to_ptr.vmem [resolvable:$true] %s20
      %26 = dma.hbm_to_vmem [thread:$0]  %s1, 192, %s21, [#allocation3], 64, 64, 4
    $region9: #{forward.1} parent=1 // pred_fallthru
      _
    // Predicated region
    $region10: #{forward.1} parent=1 // pred_check
      _
    $region11: #{forward.1} parent=1 // pred_check_branch
      %28 = sbr.rel (0) target = $region13
    $region12: #{forward.1} parent=1 // pred_region
      _
    $region13: #{forward.1} parent=1 // pred_fallthru
      _
    // Predicated region
    $region14: #{forward.1} parent=1 // pred_check
      _
    $region15: #{forward.1} parent=1 // pred_check_branch
      %30 = sbr.rel (0) target = $region17
    $region16: #{forward.1} parent=1 // pred_region
      %s32 = ssub.s32 1024, 1024
      %33 = vsyncadd [#allocation6], %s32
      %s34 = sshll.u32 [#allocation5], 4
      %s35 = int_to_ptr.vmem [resolvable:$true] %s34
      %40 = dma.hbm_to_vmem [thread:$0]  %s3, 1024, %s35, [#allocation6], 64, 64, 4
    $region17: #{forward.1} parent=1 // pred_fallthru
      _
    // Predicated region
    $region18: #{forward.1} parent=1 // pred_check
      _
    $region19: #{forward.1} parent=1 // pred_check_branch
      %42 = sbr.rel (0) target = $region21
    $region20: #{forward.1} parent=1 // pred_region
      _
    $region21: #{forward.1} parent=1 // pred_fallthru
      _
    // Predicated region
    $region22: #{forward.1} parent=1 // pred_check
      _
    $region23: #{forward.1} parent=1 // pred_check_branch
      %44 = sbr.rel (0) target = $region25
    $region24: #{forward.1} parent=1 // pred_region
      %45 = dma.done [#allocation3], 192
    $region25: #{forward.1} parent=1 // pred_fallthru
      _
    // Predicated region
    $region26: #{forward.1} parent=1 // pred_check
      _
    $region27: #{forward.1} parent=1 // pred_check_branch
      %47 = sbr.rel (0) target = $region29
    $region28: #{forward.1} parent=1 // pred_region
      %48 = dma.done [#allocation6], 1024
    $region29: #{forward.1} parent=1 // pred_fallthru
      _
    %v49 = vld [vmem:[%s0] sm:$0x1]
    %v50 = vld [vmem:[#allocation2] sm:$0xf]
    %v51 = vld [vmem:[#allocation2 + $0x4] sm:$0xf]
    %v52 = vld [vmem:[#allocation2 + $0x8] sm:$0xf]
    %v53 = vunpack.c.l.bf16 %v50
    %v54 = vunpack.c.l.bf16 %v51
    %v55 = vunpack.c.l.bf16 %v52
    %v56 = vld [vmem:[%s2] sm:$0x1]
    %vm57 = vcmask 195584
    %v59 = vsel %vm57, %v49, 0
    %61 = vmatprep.subr.mxu0 0.0
    %62 = vmatpush1.msra.mxu0 0.0
    %63 = vmatprep.subr.mxu0 0.0
    %64 = vmatpush1.msra.mxu0 0.0
    %65 = vmatprep.subr.mxu0 0.0
    %66 = vmatpush1.msra.mxu0 0.0
    %67 = vmatprep.subr.mxu0 0.0
    %68 = vmatpush1.msra.mxu0 0.0
    %69 = vmatprep.subr.mxu0 0.0
    %70 = vmatpush1.msra.mxu0 0.0
    %71 = vmatprep.subr.mxu0 0.0
    %72 = vmatpush1.msra.mxu0 0.0
    %73 = vmatprep.subr.mxu0 0.0
    %74 = vmatpush1.msra.mxu0 0.0
    %75 = vmatprep.subr.mxu0 0.0
    %76 = vmatpush1.msra.mxu0 0.0
    %77 = vmatprep.subr.mxu0 0.0
    %78 = vmatpush1.msra.mxu0 0.0
    %79 = vmatprep.subr.mxu0 0.0
    %80 = vmatpush1.msra.mxu0 0.0
    %81 = vmatprep.subr.mxu0 0.0
    %82 = vmatpush1.msra.mxu0 0.0
    %83 = vmatprep.subr.mxu0 0.0
    %84 = vmatpush1.msra.mxu0 0.0
    %85 = vmatprep.subr.mxu0 0.0
    %86 = vmatpush1.msra.mxu0 0.0
    %87 = vmatprep.subr.mxu0 0.0
    %88 = vmatpush1.msra.mxu0 %v55
    %89 = vmatprep.subr.mxu0 0.0
    %90 = vmatpush1.msra.mxu0 %v54
    %91 = vmatprep.subr.mxu0 0.0
    %92 = vmatpush1.msra.mxu0 %v53
    %93 = vmatprep.subr.mxu0 0.0
    %94 = vmatpush2.msra.mxu0 0.0
    %95 = vmatprep.subr.mxu0 0.0
    %96 = vmatpush2.msra.mxu0 0.0
    %97 = vmatprep.subr.mxu0 0.0
    %98 = vmatpush2.msra.mxu0 0.0
    %99 = vmatprep.subr.mxu0 0.0
    %100 = vmatpush2.msra.mxu0 0.0
    %101 = vmatprep.subr.mxu0 0.0
    %102 = vmatpush2.msra.mxu0 0.0
    %103 = vmatprep.subr.mxu0 0.0
    %104 = vmatpush2.msra.mxu0 0.0
    %105 = vmatprep.subr.mxu0 0.0
    %106 = vmatpush2.msra.mxu0 0.0
    %107 = vmatprep.subr.mxu0 0.0
    %108 = vmatpush2.msra.mxu0 0.0
    %109 = vmatprep.subr.mxu0 0.0
    %110 = vmatpush2.msra.mxu0 0.0
    %111 = vmatprep.subr.mxu0 0.0
    %112 = vmatpush2.msra.mxu0 0.0
    %113 = vmatprep.subr.mxu0 0.0
    %114 = vmatpush2.msra.mxu0 0.0
    %115 = vmatprep.subr.mxu0 0.0
    %116 = vmatpush2.msra.mxu0 0.0
    %117 = vmatprep.subr.mxu0 0.0
    %118 = vmatpush2.msra.mxu0 0.0
    %119 = vmatprep.subr.mxu0 0.0
    %120 = vmatpush2.msra.mxu0 0.0
    %121 = vmatprep.subr.mxu0 0.0
    %122 = vmatpush2.msra.mxu0 0.0
    %123 = vmatprep.subr.mxu0 0.0
    %124 = vmatpush2.msra.mxu0 0.0
    %125 = vmatprep.mubr.f32.mxu0 0.0
    %126 = vmatmul.mubr.f32.gmra.mxu0 %v59
    %v127 = vpop.f32.mrf.mxu0
    %v128 = vadd.f32 %v56, %v127
    %v129 = vpop.f32.mrf.mxu0
    %130 = vdwg.mxu0
    %v131 = vmax.f32 %v128, 0.0
    %v132 = vld [vmem:[#allocation5] sm:$0xf]
    %v133 = vld [vmem:[#allocation5 + $0x4] sm:$0xf]
    %v134 = vld [vmem:[#allocation5 + $0x8] sm:$0xf]
    %v135 = vld [vmem:[#allocation5 + $0xc] sm:$0xf]
    %v136 = vld [vmem:[#allocation5 + $0x10] sm:$0xf]
    %v137 = vld [vmem:[#allocation5 + $0x14] sm:$0xf]
    %v138 = vld [vmem:[#allocation5 + $0x18] sm:$0xf]
    %v139 = vld [vmem:[#allocation5 + $0x1c] sm:$0xf]
    %v140 = vld [vmem:[#allocation5 + $0x20] sm:$0xf]
    %v141 = vld [vmem:[#allocation5 + $0x24] sm:$0xf]
    %v142 = vld [vmem:[#allocation5 + $0x28] sm:$0xf]
    %v143 = vld [vmem:[#allocation5 + $0x2c] sm:$0xf]
    %v144 = vld [vmem:[#allocation5 + $0x30] sm:$0xf]
    %v145 = vld [vmem:[#allocation5 + $0x34] sm:$0xf]
    %v146 = vld [vmem:[#allocation5 + $0x38] sm:$0xf]
    %v147 = vld [vmem:[#allocation5 + $0x3c] sm:$0xf]
    %v148 = vunpack.c.l.bf16 %v132
    %v149 = vunpack.c.l.bf16 %v133
    %v150 = vunpack.c.l.bf16 %v134
    %v151 = vunpack.c.l.bf16 %v135
    %v152 = vunpack.c.l.bf16 %v136
    %v153 = vunpack.c.l.bf16 %v137
    %v154 = vunpack.c.l.bf16 %v138
    %v155 = vunpack.c.l.bf16 %v139
    %v156 = vunpack.c.l.bf16 %v140
    %v157 = vunpack.c.l.bf16 %v141
    %v158 = vunpack.c.l.bf16 %v142
    %v159 = vunpack.c.l.bf16 %v143
    %v160 = vunpack.c.l.bf16 %v144
    %v161 = vunpack.c.l.bf16 %v145
    %v162 = vunpack.c.l.bf16 %v146
    %v163 = vunpack.c.l.bf16 %v147
    %v164 = vld [vmem:[%s4] sm:$0x1]
    %165 = vmatprep.subr.mxu0 0.0
    %166 = vmatpush1.msra.mxu0 %v163
    %167 = vmatprep.subr.mxu0 0.0
    %168 = vmatpush1.msra.mxu0 %v162
    %169 = vmatprep.subr.mxu0 0.0
    %170 = vmatpush1.msra.mxu0 %v161
    %171 = vmatprep.subr.mxu0 0.0
    %172 = vmatpush1.msra.mxu0 %v160
    %173 = vmatprep.subr.mxu0 0.0
    %174 = vmatpush1.msra.mxu0 %v159
    %175 = vmatprep.subr.mxu0 0.0
    %176 = vmatpush1.msra.mxu0 %v158
    %177 = vmatprep.subr.mxu0 0.0
    %178 = vmatpush1.msra.mxu0 %v157
    %179 = vmatprep.subr.mxu0 0.0
    %180 = vmatpush1.msra.mxu0 %v156
    %181 = vmatprep.subr.mxu0 0.0
    %182 = vmatpush1.msra.mxu0 %v155
    %183 = vmatprep.subr.mxu0 0.0
    %184 = vmatpush1.msra.mxu0 %v154
    %185 = vmatprep.subr.mxu0 0.0
    %186 = vmatpush1.msra.mxu0 %v153
    %187 = vmatprep.subr.mxu0 0.0
    %188 = vmatpush1.msra.mxu0 %v152
    %189 = vmatprep.subr.mxu0 0.0
    %190 = vmatpush1.msra.mxu0 %v151
    %191 = vmatprep.subr.mxu0 0.0
    %192 = vmatpush1.msra.mxu0 %v150
    %193 = vmatprep.subr.mxu0 0.0
    %194 = vmatpush1.msra.mxu0 %v149
    %195 = vmatprep.subr.mxu0 0.0
    %196 = vmatpush1.msra.mxu0 %v148
    %197 = vmatprep.subr.mxu0 0.0
    %198 = vmatpush2.msra.mxu0 0.0
    %199 = vmatprep.subr.mxu0 0.0
    %200 = vmatpush2.msra.mxu0 0.0
    %201 = vmatprep.subr.mxu0 0.0
    %202 = vmatpush2.msra.mxu0 0.0
    %203 = vmatprep.subr.mxu0 0.0
    %204 = vmatpush2.msra.mxu0 0.0
    %205 = vmatprep.subr.mxu0 0.0
    %206 = vmatpush2.msra.mxu0 0.0
    %207 = vmatprep.subr.mxu0 0.0
    %208 = vmatpush2.msra.mxu0 0.0
    %209 = vmatprep.subr.mxu0 0.0
    %210 = vmatpush2.msra.mxu0 0.0
    %211 = vmatprep.subr.mxu0 0.0
    %212 = vmatpush2.msra.mxu0 0.0
    %213 = vmatprep.subr.mxu0 0.0
    %214 = vmatpush2.msra.mxu0 0.0
    %215 = vmatprep.subr.mxu0 0.0
    %216 = vmatpush2.msra.mxu0 0.0
    %217 = vmatprep.subr.mxu0 0.0
    %218 = vmatpush2.msra.mxu0 0.0
    %219 = vmatprep.subr.mxu0 0.0
    %220 = vmatpush2.msra.mxu0 0.0
    %221 = vmatprep.subr.mxu0 0.0
    %222 = vmatpush2.msra.mxu0 0.0
    %223 = vmatprep.subr.mxu0 0.0
    %224 = vmatpush2.msra.mxu0 0.0
    %225 = vmatprep.subr.mxu0 0.0
    %226 = vmatpush2.msra.mxu0 0.0
    %227 = vmatprep.subr.mxu0 0.0
    %228 = vmatpush2.msra.mxu0 0.0
    %229 = vmatprep.mubr.f32.mxu0 0.0
    %230 = vmatmul.mubr.f32.gmra.mxu0 %v131
    %v231 = vpop.f32.mrf.mxu0
    %v232 = vadd.f32 %v164, %v231
    %v233 = vpop.f32.mrf.mxu0
    %234 = vdwg.mxu0
    %v235 = vmax.f32 %v232, 0.0
    %236 = vst [vmem:[#allocation7] sm:$0x1] %v235
    // Predicated region
    $region30: #{forward.1} parent=1 // pred_check
      _
    $region31: #{forward.1} parent=1 // pred_check_branch
      %238 = sbr.rel (0) target = $region33
    $region32: #{forward.1} parent=1 // pred_region
      %s240 = ssub.s32 16, 16
      %241 = vsyncadd [#allocation4], %s240
      %s243 = sshll.u32 [#allocation7], 4
      %s244 = int_to_ptr.vmem [resolvable:$true] %s243
      %246 = dma.vmem_to_hbm [thread:$0]  %s244, 16, %s5, [#allocation4]
    $region33: #{forward.1} parent=1 // pred_fallthru
      _
    // Predicated region
    $region34: #{forward.1} parent=1 // pred_check
      _
    $region35: #{forward.1} parent=1 // pred_check_branch
      %248 = sbr.rel (0) target = $region37
    $region36: #{forward.1} parent=1 // pred_region
      %249 = dma.done [#allocation4], 16
    $region37: #{forward.1} parent=1 // pred_fallthru
      _
    %250 = vsyncpa [#allocation3], 1
    %251 = vsyncpa [#allocation6], 1
    %252 = vsyncpa [#allocation4], 1

</llo_original>
